<compile_context>
chip_gen: v7x
topology: tpu7x:2x2x1
jax: 0.10.0
libtpu: 0.0.40
codegen_flags: <defaults>
</compile_context>

<pallas_src>
import jax
import jax.numpy as jnp
from jax.experimental import pallas as pl
from jax.experimental.pallas import tpu as pltpu

_SUBLANE = 8  # sublane width (second-to-last dim granularity)


def _round_up(n: int, m: int) -> int:
    return ((n + m - 1) // m) * m


def _tpu_topology():
    """(num_tensorcores_per_device, physical_vmem_bytes) with safe fallbacks."""
    num_tc = 1
    vmem_cap = 64 << 20  # assume the smallest (v7x) if detection fails
    try:
        info = pltpu.get_tpu_info()
        vmem_cap = int(getattr(info, "vmem_capacity_bytes", vmem_cap))
        for attr in ("num_tensorcores", "tensorcore_count", "num_cores", "core_count"):
            val = getattr(info, attr, None)
            if val:
                num_tc = int(val)
                break
    except Exception:
        pass
    try:
        kind = jax.devices()[0].device_kind.lower()
        if "v7" in kind:
            num_tc = max(num_tc, 2)  # v7x: 2 TensorCores per chip
    except Exception:
        pass
    return num_tc, vmem_cap


def prepare_blstats_encoder_params(weight_hf, bias_h, param_dtype=jnp.float32):
    """Build kernel-layout params ONCE at init (not per forward call).

    weight_hf: [H, F] nn.Linear weight.   bias_h: [H].
    Returns (weight_fh [F, H], bias_1h [1, H]) in `param_dtype` (f32 default;
    bf16 halves per-call weight HBM bytes on v5e-class chips at small accuracy cost).
    """
    w = jnp.asarray(weight_hf).astype(param_dtype).T            # [F, H]
    b = jnp.asarray(bias_h).astype(param_dtype).reshape(1, -1)  # [1, H]
    return w, b


def _blstats_encoder_kernel(x_ref, w_ref, b_ref, o_ref):
    # x_ref: [TB, F] (original dtype), w_ref: [F, H], b_ref: [1, H], o_ref: [TB, H] f32.
    x = x_ref[...].astype(jnp.float32)                 # torch `.float()` happens in-kernel
    w = w_ref[...].astype(jnp.float32)
    y = jnp.dot(x, w, preferred_element_type=jnp.float32) + b_ref[...].astype(jnp.float32)
    o_ref[...] = y * jax.nn.sigmoid(y)                 # SiLU: MXU matmul, EUP exp, VPU mul


def _vmem_bytes_per_step(tile_b, F, H, x_itemsize, w_itemsize):
    # BlockSpec double-buffers every operand; count params double-buffered too.
    return (2 * tile_b * F * x_itemsize          # x tiles
            + 2 * tile_b * H * 4                 # f32 output tiles
            + 2 * (F * H + H) * w_itemsize)      # weight + bias


def _pick_tiling(B, F, H, x_itemsize, w_itemsize, tile_b):
    num_tc, vmem_cap = _tpu_topology()

    # Soft per-step VMEM budget: comfortably inside physical VMEM on every chip.
    soft_budget = min(48 << 20, vmem_cap // 2)
    per_row = 2 * F * x_itemsize + 2 * H * 4
    fixed = 2 * (F * H + H) * w_itemsize
    cap_rows = max(_SUBLANE, (soft_budget - fixed) // max(per_row, 1))
    cap_rows = min(8192 if num_tc <= 1 else 4096, cap_rows)

    if tile_b is None:
        if num_tc >= 2 and B > 2 * _SUBLANE:
            # >= 1 grid step per TensorCore so both v7x cores get work.
            tile_b = _round_up(pl.cdiv(B, num_tc), _SUBLANE)
        else:
            # Single-TC chips: the grid is a serial loop; prefer one big step.
            tile_b = B
    tile_b = int(tile_b)

    if tile_b >= B and B <= cap_rows:
        tile_b = B                                    # one full-batch block, full-dim BlockSpec
    else:
        tile_b = max(_SUBLANE, min(tile_b, cap_rows, B))
        tile_b = (tile_b // _SUBLANE) * _SUBLANE      # sublane-aligned interior tiles
    grid = (pl.cdiv(B, tile_b),)                      # ragged last block handled by Pallas masking

    needed = _vmem_bytes_per_step(tile_b, F, H, x_itemsize, w_itemsize)
    vmem_limit = None
    if needed > (16 << 20):                           # above the smallest scoped default (v5e)
        # Clamp well below physical VMEM (v7x: 64 MiB); tile_b is already capped.
        vmem_limit = int(min(needed + (4 << 20), vmem_cap - (8 << 20), 96 << 20))
    return tile_b, grid, vmem_limit


def blstats_encoder_forward(x, weight_fh, bias_1h, *, tile_b=None):
    """SiLU(x.float() @ weight_fh + bias_1h) as a single Pallas TPU kernel.

    Args:
      x:         [B, F] array of any int/float dtype (cast to f32 in-kernel,
                 matching torch `.float()`).
      weight_fh: [F, H] prepared weight (see prepare_blstats_encoder_params).
      bias_1h:   [1, H] prepared bias.
      tile_b:    optional batch tile (multiple of 8 recommended unless == B).
    Returns:
      [B, H] float32.
    """
    B, F = x.shape
    F2, H = weight_fh.shape
    assert F == F2, (F, F2)
    assert bias_1h.shape == (1, H), bias_1h.shape

    # TPU has no 64-bit vector path; narrow on host if needed (rare; no-op otherwise).
    if x.dtype.itemsize > 4:
        x = x.astype(jnp.int32 if jnp.issubdtype(x.dtype, jnp.integer) else jnp.float32)

    tile_b, grid, vmem_limit = _pick_tiling(
        B, F, H, x.dtype.itemsize, weight_fh.dtype.itemsize, tile_b)
    extra = {} if vmem_limit is None else {"vmem_limit_bytes": vmem_limit}

    return pl.pallas_call(
        _blstats_encoder_kernel,
        out_shape=jax.ShapeDtypeStruct((B, H), jnp.float32),
        grid_spec=pltpu.PrefetchScalarGridSpec(
            num_scalar_prefetch=0,
            grid=grid,
            in_specs=[
                pl.BlockSpec((tile_b, F), lambda i: (i, 0)),  # x tile (full F)
                pl.BlockSpec((F, H), lambda i: (0, 0)),       # weight, VMEM-resident
                pl.BlockSpec((1, H), lambda i: (0, 0)),       # bias row, VMEM-resident
            ],
            out_specs=pl.BlockSpec((tile_b, H), lambda i: (i, 0)),
        ),
        compiler_params=pltpu.CompilerParams(
            dimension_semantics=("parallel",),
            **extra,
        ),
    )(x, weight_fh, bias_1h)


def _reference(x, weight_fh, bias_1h):
    y = x.astype(jnp.float32) @ weight_fh.astype(jnp.float32) + bias_1h.astype(jnp.float32)
    return y * jax.nn.sigmoid(y)


if __name__ == "__main__":
    key = jax.random.PRNGKey(0)
    k1, k2, k3, k4 = jax.random.split(key, 4)

    batch = 8
    blstats_size = 27   # NetHack blstats vector length
    h_dim = 32

    # nn.Linear-layout parameters ([H, F] weight), prepared ONCE for the kernel.
    bound = 1.0 / (blstats_size ** 0.5)
    weight_hf = jax.random.uniform(
        k1, (h_dim, blstats_size), jnp.float32, minval=-bound, maxval=bound)
    bias_h = jax.random.uniform(
        k2, (h_dim,), jnp.float32, minval=-bound, maxval=bound)
    w_fh, b_1h = prepare_blstats_encoder_params(weight_hf, bias_h)

    # Float blstats input, small batch (default tiling: single grid step).
    x = jax.random.normal(k3, (batch, blstats_size), jnp.float32) * 5.0
    out = jax.block_until_ready(blstats_encoder_forward(x, w_fh, b_1h))
    ref = _reference(x, w_fh, b_1h)
    assert out.shape == (batch, h_dim)
    assert jnp.allclose(out, ref, atol=1e-5, rtol=1e-5), "mismatch vs reference (float x)"

    # Integer blstats input (as in NetHack), ragged batch + explicit multi-step
    # grid (tile_b=8) to exercise tiling, the masked ragged last block, and the
    # in-kernel .float() cast.
    x_int = jax.random.randint(k4, (37, blstats_size), -20, 20, jnp.int32)
    out2 = jax.block_until_ready(
        blstats_encoder_forward(x_int, w_fh, b_1h, tile_b=8))
    ref2 = _reference(x_int, w_fh, b_1h)
    assert out2.shape == (37, h_dim)
    assert jnp.allclose(out2, ref2, atol=1e-5, rtol=1e-5), "mismatch vs reference (int x)"

    print("KERNEL_OK")
</pallas_src>

<mosaic_0001>
module attributes {stable_mosaic.version = 11 : i64} {
  func.func @_blstats_encoder_kernel(%arg0: i32, %arg1: memref<8x27xf32, #tpu.memory_space<vmem>>, %arg2: memref<27x32xf32, #tpu.memory_space<vmem>>, %arg3: memref<1x32xf32, #tpu.memory_space<vmem>>, %arg4: memref<8x32xf32, #tpu.memory_space<vmem>>) attributes {dimension_semantics = [#tpu.dimension_semantics<parallel>], iteration_bounds = array<i64: 1>, scalar_prefetch = 0 : i64, scratch_operands = 0 : i64, tpu.core_type = #tpu.core_type<tc>, window_params = [{transform_indices = @transform_0, window_bounds = array<i64: 8, 27>}, {pipeline_mode = #tpu.pipeline_mode<synchronous>, transform_indices = @transform_1, window_bounds = array<i64: 27, 32>}, {pipeline_mode = #tpu.pipeline_mode<synchronous>, transform_indices = @transform_2, window_bounds = array<i64: 1, 32>}, {transform_indices = @transform_3, window_bounds = array<i64: 8, 32>}]} {
    %c0 = arith.constant 0 : index
    %c0_0 = arith.constant 0 : index
    %0 = vector.load %arg1[%c0, %c0_0] : memref<8x27xf32, #tpu.memory_space<vmem>>, vector<8x27xf32>
    %c0_1 = arith.constant 0 : index
    %c0_2 = arith.constant 0 : index
    %1 = vector.load %arg2[%c0_1, %c0_2] : memref<27x32xf32, #tpu.memory_space<vmem>>, vector<27x32xf32>
    %cst = arith.constant dense<0.000000e+00> : vector<8x32xf32>
    %2 = tpu.matmul %0, %1, %cst {dimension_numbers = #tpu.dot_dimension_numbers<[1], [0], [0], [1], [0, 0, 1, 1], [], []>} : vector<8x27xf32>, vector<27x32xf32>, vector<8x32xf32> -> vector<8x32xf32>
    %c0_3 = arith.constant 0 : index
    %c0_4 = arith.constant 0 : index
    %3 = vector.load %arg3[%c0_3, %c0_4] : memref<1x32xf32, #tpu.memory_space<vmem>>, vector<1x32xf32>
    %4 = vector.broadcast %3 : vector<1x32xf32> to vector<8x32xf32>
    %5 = arith.addf %2, %4 : vector<8x32xf32>
    %6 = arith.negf %5 : vector<8x32xf32>
    %7 = math.exp %6 : vector<8x32xf32>
    %cst_5 = arith.constant 1.000000e+00 : f32
    %8 = vector.broadcast %cst_5 : f32 to vector<8x32xf32>
    %9 = arith.addf %8, %7 : vector<8x32xf32>
    %10 = arith.divf %8, %9 : vector<8x32xf32>
    %11 = arith.mulf %5, %10 : vector<8x32xf32>
    %c0_6 = arith.constant 0 : index
    %c0_7 = arith.constant 0 : index
    %12 = vector.load %arg4[%c0_6, %c0_7] : memref<8x32xf32, #tpu.memory_space<vmem>>, vector<8x32xf32>
    tpu.vector_store %arg4[%c0_6, %c0_7], %11 {strides = array<i32>} : memref<8x32xf32, #tpu.memory_space<vmem>>, vector<8x32xf32>,
    return
  }
  func.func @transform_0(%arg0: i32) -> (i32, i32) {
    %c0_i32 = arith.constant 0 : i32
    %c0_i32_0 = arith.constant 0 : i32
    return %arg0, %c0_i32 : i32, i32
  }
  func.func @transform_1(%arg0: i32) -> (i32, i32) {
    %c0_i32 = arith.constant 0 : i32
    %c0_i32_0 = arith.constant 0 : i32
    %c0_i32_1 = arith.constant 0 : i32
    return %c0_i32, %c0_i32_0 : i32, i32
  }
  func.func @transform_2(%arg0: i32) -> (i32, i32) {
    %c0_i32 = arith.constant 0 : i32
    %c0_i32_0 = arith.constant 0 : i32
    %c0_i32_1 = arith.constant 0 : i32
    return %c0_i32, %c0_i32_0 : i32, i32
  }
  func.func @transform_3(%arg0: i32) -> (i32, i32) {
    %c0_i32 = arith.constant 0 : i32
    %c0_i32_0 = arith.constant 0 : i32
    return %arg0, %c0_i32 : i32, i32
  }
}

</mosaic_0001>

<llo_original>
// kernel: tpu_custom_call.1
$region0: #{tpu_custom_call.1}
  #allocation0 [shape = 'u32[]', space=smem, size = 0x4, offset = 0x4, fixed_abs, tag = 'smem constant byte address 0x4 - core index']
  #allocation1 [shape = 'u32[144,128]{1,0:T(1,128)}', space=vmem, size = 0x12000, scoped, tag = 'internal scratch']
  %s0 = inlined_call_operand.hbm [shape: f32[8,27], index: 0, kind: input, shape index: {}]
  %s1 = inlined_call_operand.hbm [shape: f32[27,32], index: 1, kind: input, shape index: {}]
  %s2 = inlined_call_operand.vmem [shape: f32[1,32], index: 2, kind: input, shape index: {}]
  %s3 = inlined_call_operand.hbm [shape: f32[8,32], index: 3, kind: output, shape index: {}]
  %s4 = sld [smem:[#allocation0]]
  $region30: #{tpu_custom_call.1} parent=0
    _
  %s6 = ssub.s32 1, %s4
  %s7 = scalar_select 0, %s6, %s4
  $region1: #{tpu_custom_call.1} parent=0
    #allocation2 [shape = 'u8[4096]{0}', space=vmem, size = 0x1000, scoped, tag = 'input window, operand 0, single buffered']
    #allocation3 [shape = 's32[1]{0}', space=sflag, size = 0x4, scoped, tag = 'scoped memory for tpu_custom_call.1']
    #allocation4 [shape = 's32[1]{0}', space=sflag, size = 0x4, scoped, tag = 'scoped memory for tpu_custom_call.1']
    #allocation5 [shape = 'u8[16384]{0}', space=vmem, size = 0x4000, scoped, tag = 'input window, operand 1, single buffered']
    #allocation6 [shape = 's32[1]{0}', space=sflag, size = 0x4, scoped, tag = 'scoped memory for tpu_custom_call.1']
    #allocation7 [shape = 'u8[4096]{0}', space=vmem, size = 0x1000, scoped, tag = 'output window, operand 0, single buffered']
    %8 = vsyncpa [#allocation3], 0
    %9 = vsyncpa [#allocation6], 0
    %10 = vsyncpa [#allocation4], 0
    // Predicated region
    $region2: #{tpu_custom_call.1} parent=1 // pred_check
      _
    $region3: #{tpu_custom_call.1} parent=1 // pred_check_branch
      %12 = sbr.rel (0) target = $region5
    $region4: #{tpu_custom_call.1} parent=1 // pred_region
      %s14 = ssub.s32 128, 128
      %15 = vsyncadd [#allocation3], %s14
      %s17 = sshll.u32 [#allocation2], 4
      %s18 = int_to_ptr.vmem [resolvable:$true] %s17
      %20 = dma.hbm_to_vmem [thread:$0]  %s0, 128, %s18, [#allocation3]
    $region5: #{tpu_custom_call.1} parent=1 // pred_fallthru
      _
    // Predicated region
    $region6: #{tpu_custom_call.1} parent=1 // pred_check
      _
    $region7: #{tpu_custom_call.1} parent=1 // pred_check_branch
      %22 = sbr.rel (0) target = $region9
    $region8: #{tpu_custom_call.1} parent=1 // pred_region
      %s24 = ssub.s32 512, 512
      %25 = vsyncadd [#allocation6], %s24
      %s26 = sshll.u32 [#allocation5], 4
      %s27 = int_to_ptr.vmem [resolvable:$true] %s26
      %32 = dma.hbm_to_vmem [thread:$0]  %s1, 512, %s27, [#allocation6], 128, 128, 8
    $region9: #{tpu_custom_call.1} parent=1 // pred_fallthru
      _
    // Predicated region
    $region10: #{tpu_custom_call.1} parent=1 // pred_check
      _
    $region11: #{tpu_custom_call.1} parent=1 // pred_check_branch
      %34 = sbr.rel (0) target = $region13
    $region12: #{tpu_custom_call.1} parent=1 // pred_region
      _
    $region13: #{tpu_custom_call.1} parent=1 // pred_fallthru
      _
    // Predicated region
    $region14: #{tpu_custom_call.1} parent=1 // pred_check
      _
    $region15: #{tpu_custom_call.1} parent=1 // pred_check_branch
      %36 = sbr.rel (0) target = $region17
    $region16: #{tpu_custom_call.1} parent=1 // pred_region
      %37 = dma.done [#allocation3], 128
    $region17: #{tpu_custom_call.1} parent=1 // pred_fallthru
      _
    // Predicated region
    $region18: #{tpu_custom_call.1} parent=1 // pred_check
      _
    $region19: #{tpu_custom_call.1} parent=1 // pred_check_branch
      %39 = sbr.rel (0) target = $region21
    $region20: #{tpu_custom_call.1} parent=1 // pred_region
      %40 = dma.done [#allocation6], 512
    $region21: #{tpu_custom_call.1} parent=1 // pred_fallthru
      _
    %v41 = vld [vmem:[#allocation2] sm:$0xff]
    %v42 = vld [vmem:[#allocation5] sm:$0xff]
    %v43 = vld [vmem:[#allocation5 + $0x8] sm:$0xff]
    %v44 = vld [vmem:[#allocation5 + $0x10] sm:$0xff]
    %v45 = vld [vmem:[#allocation5 + $0x18] sm:$0x7]
    %v46 = vld [vmem:[%s2] sm:$0x1]
    %v48 = vlaneseq
    %v49 = vshrl.u32 %v48, 7
    %v50 = vsub.s32 0, %v49
    %v51 = vrot.slane %v46, %v50
    %vm53 = vcmask 220160
    %v55 = vsel %vm53, %v41, 0
    %vm57 = vcmask 1042432
    %v59 = vsel %vm57, %v45, 0
    %61 = vmatprep.subr.mxu0 0.0
    %62 = vmatpush1.msra.mxu0 %v42
    %63 = vmatprep.subr.mxu0 0.0
    %64 = vmatpush1.msra.mxu0 %v43
    %65 = vmatprep.subr.mxu0 0.0
    %66 = vmatpush1.msra.mxu0 %v44
    %67 = vmatprep.subr.mxu0 0.0
    %68 = vmatpush1.msra.mxu0 %v59
    %69 = vmatprep.subr.mxu0 0.0
    %70 = vmatpush1.msra.mxu0 0.0
    %71 = vmatprep.subr.mxu0 0.0
    %72 = vmatpush1.msra.mxu0 0.0
    %73 = vmatprep.subr.mxu0 0.0
    %74 = vmatpush1.msra.mxu0 0.0
    %75 = vmatprep.subr.mxu0 0.0
    %76 = vmatpush1.msra.mxu0 0.0
    %77 = vmatprep.subr.mxu0 0.0
    %78 = vmatpush1.msra.mxu0 0.0
    %79 = vmatprep.subr.mxu0 0.0
    %80 = vmatpush1.msra.mxu0 0.0
    %81 = vmatprep.subr.mxu0 0.0
    %82 = vmatpush1.msra.mxu0 0.0
    %83 = vmatprep.subr.mxu0 0.0
    %84 = vmatpush1.msra.mxu0 0.0
    %85 = vmatprep.subr.mxu0 0.0
    %86 = vmatpush1.msra.mxu0 0.0
    %87 = vmatprep.subr.mxu0 0.0
    %88 = vmatpush1.msra.mxu0 0.0
    %89 = vmatprep.subr.mxu0 0.0
    %90 = vmatpush1.msra.mxu0 0.0
    %91 = vmatprep.subr.mxu0 0.0
    %92 = vmatpush1.msra.mxu0 0.0
    %93 = vmatprep.subr.mxu0 0.0
    %94 = vmatpush1.msra.mxu0 0.0
    %95 = vmatprep.subr.mxu0 0.0
    %96 = vmatpush1.msra.mxu0 0.0
    %97 = vmatprep.subr.mxu0 0.0
    %98 = vmatpush1.msra.mxu0 0.0
    %99 = vmatprep.subr.mxu0 0.0
    %100 = vmatpush1.msra.mxu0 0.0
    %101 = vmatprep.subr.mxu0 0.0
    %102 = vmatpush1.msra.mxu0 0.0
    %103 = vmatprep.subr.mxu0 0.0
    %104 = vmatpush1.msra.mxu0 0.0
    %105 = vmatprep.subr.mxu0 0.0
    %106 = vmatpush1.msra.mxu0 0.0
    %107 = vmatprep.subr.mxu0 0.0
    %108 = vmatpush1.msra.mxu0 0.0
    %109 = vmatprep.subr.mxu0 0.0
    %110 = vmatpush1.msra.mxu0 0.0
    %111 = vmatprep.subr.mxu0 0.0
    %112 = vmatpush1.msra.mxu0 0.0
    %113 = vmatprep.subr.mxu0 0.0
    %114 = vmatpush1.msra.mxu0 0.0
    %115 = vmatprep.subr.mxu0 0.0
    %116 = vmatpush1.msra.mxu0 0.0
    %117 = vmatprep.subr.mxu0 0.0
    %118 = vmatpush1.msra.mxu0 0.0
    %119 = vmatprep.subr.mxu0 0.0
    %120 = vmatpush1.msra.mxu0 0.0
    %121 = vmatprep.subr.mxu0 0.0
    %122 = vmatpush1.msra.mxu0 0.0
    %123 = vmatprep.subr.mxu0 0.0
    %124 = vmatpush1.msra.mxu0 0.0
    %125 = vmatprep.mubr.f32.mxu0 0.0
    %126 = vmatmul.mubr.f32.gmra.mrb[0].mxu0 %v55
    %v127 = vpop.f32.mrb[0].mxu0
    %v128 = vadd.f32 %v51, %v127
    %v129 = vpop.f32.mrb[0].mxu0
    %130 = vdwg.mxu0
    %v131 = vxor.u32 %v128, 2147483648
    %v132 = vmul.f32 %v131, 1.442695
    %v133 = vpow.pop %v132
    %v134 = vadd.f32 %v133, 1.0
    %v135 = vrcp.pop %v134
    %v136 = vmul.f32 1.0, %v135
    %v137 = vmul.f32 %v128, %v136
    %vm138 = vcmask 261120
    %139 = vst.msk [vmem:[#allocation7] sm:$0xff] %vm138, %v137
    // Predicated region
    $region22: #{tpu_custom_call.1} parent=1 // pred_check
      _
    $region23: #{tpu_custom_call.1} parent=1 // pred_check_branch
      %141 = sbr.rel (0) target = $region25
    $region24: #{tpu_custom_call.1} parent=1 // pred_region
      %s143 = ssub.s32 128, 128
      %144 = vsyncadd [#allocation4], %s143
      %s146 = sshll.u32 [#allocation7], 4
      %s147 = int_to_ptr.vmem [resolvable:$true] %s146
      %149 = dma.vmem_to_hbm [thread:$0]  %s147, 128, %s3, [#allocation4]
    $region25: #{tpu_custom_call.1} parent=1 // pred_fallthru
      _
    // Predicated region
    $region26: #{tpu_custom_call.1} parent=1 // pred_check
      _
    $region27: #{tpu_custom_call.1} parent=1 // pred_check_branch
      %151 = sbr.rel (0) target = $region29
    $region28: #{tpu_custom_call.1} parent=1 // pred_region
      %152 = dma.done [#allocation4], 128
    $region29: #{tpu_custom_call.1} parent=1 // pred_fallthru
      _
    %153 = vsyncpa [#allocation3], 1
    %154 = vsyncpa [#allocation6], 1
    %155 = vsyncpa [#allocation4], 1

</llo_original>
